<compile_context>
chip_gen: v6e
topology: v6e:2x2x1
jax: 0.10.0
libtpu: 0.0.40
codegen_flags: <defaults>
</compile_context>

<pallas_src>
import functools

import jax
import jax.numpy as jnp
from jax import lax
from jax.experimental import pallas as pl
from jax.experimental.pallas import tpu as pltpu

KSIZE = 3  # 3x3 convs, padding=1 ("same")


# ---------------------------------------------------------------------------
# Kernels
# ---------------------------------------------------------------------------
def _conv1_relu_kernel(cols_ref, w_ref, b_ref, y_ref):
    """relu(conv1) as a single packed matmul.

    cols_ref: [K1, M]  im2col of the real/imag-packed input, K1 = 9*2C
    w_ref:    [C, K1]  packed conv1 weight
    b_ref:    [C, 1]
    y_ref:    [C, M]   lane-dense output (M = B*H*W)
    """
    y = jnp.dot(w_ref[...], cols_ref[...], preferred_element_type=jnp.float32)
    y_ref[...] = jnp.maximum(y + b_ref[...], 0.0).astype(y_ref.dtype)


def _conv2_ca_residual_kernel(cols_ref, w_ref, b_ref, fc1w_ref, fc1b_ref,
                              fc2w_ref, fc2b_ref, selt_ref, sel_ref,
                              xflat_ref, out_ref, *, channels, inv_hw):
    """conv2 + complex channel attention + residual add, fused.

    cols_ref:  [K2, M]   im2col of relu(conv1), K2 = 9*C
    w_ref:     [2C, K2]  packed conv2 weight (rows: C real rows, then C imag)
    b_ref:     [2C, 1]
    fc1w_ref:  [Rp, C], fc1b_ref: [Rp, 1]   (reduction dim zero-padded to Rp)
    fc2w_ref:  [C, Rp], fc2b_ref: [C, 1]
    selt_ref:  [M, Bp]   0/1 column -> batch selector (transposed)
    sel_ref:   [Bp, M]   0/1 batch -> column selector
    xflat_ref: [2C, M]   residual input in the same packed layout as the output
    out_ref:   [2C, M]
    """
    # conv2: one packed MXU matmul, f32 accumulation.
    y2 = jnp.dot(w_ref[...], cols_ref[...], preferred_element_type=jnp.float32)
    y2 = y2 + b_ref[...]                                       # [2C, M]

    # ---- complex channel attention -------------------------------------
    real = y2[:channels, :]
    imag = y2[channels:, :]
    amp = jnp.sqrt(real * real + imag * imag)                  # [C, M]

    # per-batch global average pool as a matmul against the 0/1 selector.
    pooled = jnp.dot(amp, selt_ref[...],
                     preferred_element_type=jnp.float32) * inv_hw      # [C, Bp]
    z = jnp.maximum(
        jnp.dot(fc1w_ref[...], pooled, preferred_element_type=jnp.float32)
        + fc1b_ref[...], 0.0)                                           # [Rp, Bp]
    t = (jnp.dot(fc2w_ref[...], z, preferred_element_type=jnp.float32)
         + fc2b_ref[...])                                               # [C, Bp]
    wgt = 1.0 / (1.0 + jnp.exp(-t))                                     # sigmoid

    # broadcast the per-(batch, channel) weight back over spatial columns.
    scale = jnp.dot(wgt, sel_ref[...],
                    preferred_element_type=jnp.float32)                 # [C, M]
    scale2 = jnp.concatenate([scale, scale], axis=0)                    # [2C, M]

    # ---- residual add ----------------------------------------------------
    out_ref[...] = (xflat_ref[...] + y2 * scale2).astype(out_ref.dtype)


# ---------------------------------------------------------------------------
# Wrapper
# ---------------------------------------------------------------------------
def _full_spec(shape):
    """Whole-array BlockSpec for a grid=(1,) call."""
    ndim = len(shape)

    def index_map(i):
        return (0,) * ndim

    return pl.BlockSpec(tuple(shape), index_map)


def _im2col(x_cbhw):
    """[Cin, B, H, W] -> [9*Cin, B*H*W], rows ordered (kh*3+kw)*Cin + cin."""
    cin, b, h, w = x_cbhw.shape
    pad = KSIZE // 2
    xp = jnp.pad(x_cbhw, ((0, 0), (0, 0), (pad, pad), (pad, pad)))
    slabs = [xp[:, :, kh:kh + h, kw:kw + w].reshape(cin, b * h * w)
             for kh in range(KSIZE) for kw in range(KSIZE)]
    return jnp.concatenate(slabs, axis=0)


@jax.jit
def rcab_forward(x, w1, b1, w2, b2, fc1w, fc1b, fc2w, fc2b):
    """RCABlock forward.  x: [B, C, H, W, 2] -> [B, C, H, W, 2]."""
    B, C, H, W, _ = x.shape
    C2, HW, M = 2 * C, H * W, B * H * W
    R = fc1w.shape[0]
    Rp = max(8, ((R + 7) // 8) * 8)
    Bp = max(8, ((B + 7) // 8) * 8)
    f32 = jnp.float32
    x = x.astype(f32)

    # packed row r = ri*C + c  <->  pytorch interleaved channel 2*c + ri
    perm = jnp.array([2 * c + ri for ri in range(2) for c in range(C)],
                     jnp.int32)

    # packed real/imag layout: [2C, B, H, W] and its flat lane-dense view.
    x_pack = jnp.transpose(x, (4, 1, 0, 2, 3)).reshape(C2, B, H, W)
    x_flat = x_pack.reshape(C2, M)

    # ---- conv1 (2C -> C) + relu -----------------------------------------
    cols1 = _im2col(x_pack)                                      # [9*2C, M]
    w1p = jnp.transpose(w1[:, perm, :, :], (0, 2, 3, 1)).reshape(
        C, KSIZE * KSIZE * C2).astype(f32)
    b1c = b1.reshape(C, 1).astype(f32)

    y1 = pl.pallas_call(
        _conv1_relu_kernel,
        out_shape=jax.ShapeDtypeStruct((C, M), f32),
        grid=(1,),
        in_specs=[_full_spec(cols1.shape), _full_spec(w1p.shape),
                  _full_spec(b1c.shape)],
        out_specs=_full_spec((C, M)),
        compiler_params=pltpu.CompilerParams(
            dimension_semantics=("arbitrary",)),
    )(cols1, w1p, b1c)

    # ---- conv2 (C -> 2C) + channel attention + residual ------------------
    cols2 = _im2col(y1.reshape(C, B, H, W))                      # [9*C, M]
    w2p = jnp.transpose(w2[perm, :, :, :], (0, 2, 3, 1)).reshape(
        C2, KSIZE * KSIZE * C).astype(f32)
    b2c = b2[perm].reshape(C2, 1).astype(f32)

    # channel-attention FC params, zero-padded to MXU-friendly shapes (exact).
    fc1w_p = jnp.zeros((Rp, C), f32).at[:R, :].set(fc1w.astype(f32))
    fc1b_p = jnp.zeros((Rp, 1), f32).at[:R, 0].set(fc1b.astype(f32))
    fc2w_p = jnp.zeros((C, Rp), f32).at[:, :R].set(fc2w.astype(f32))
    fc2b_p = fc2b.reshape(C, 1).astype(f32)

    # 0/1 selector mapping flat columns to batch elements (padded rows are 0).
    col_batch = jnp.arange(M, dtype=jnp.int32) // HW
    sel = (col_batch[None, :] ==
           jnp.arange(Bp, dtype=jnp.int32)[:, None]).astype(f32)   # [Bp, M]
    selt = jnp.transpose(sel)                                      # [M, Bp]

    kernel2 = functools.partial(_conv2_ca_residual_kernel,
                                channels=C, inv_hw=1.0 / float(HW))
    out_flat = pl.pallas_call(
        kernel2,
        out_shape=jax.ShapeDtypeStruct((C2, M), f32),
        grid=(1,),
        in_specs=[_full_spec(cols2.shape), _full_spec(w2p.shape),
                  _full_spec(b2c.shape), _full_spec(fc1w_p.shape),
                  _full_spec(fc1b_p.shape), _full_spec(fc2w_p.shape),
                  _full_spec(fc2b_p.shape), _full_spec(selt.shape),
                  _full_spec(sel.shape), _full_spec(x_flat.shape)],
        out_specs=_full_spec((C2, M)),
        compiler_params=pltpu.CompilerParams(
            dimension_semantics=("arbitrary",)),
    )(cols2, w2p, b2c, fc1w_p, fc1b_p, fc2w_p, fc2b_p, selt, sel, x_flat)

    # back to the PyTorch layout [B, C, H, W, 2].
    return jnp.transpose(out_flat.reshape(2, C, B, H, W), (2, 1, 3, 4, 0))


# ---------------------------------------------------------------------------
# Pure-JAX reference (mirrors the PyTorch RCABlock forward)
# ---------------------------------------------------------------------------
def _reference(x, w1, b1, w2, b2, fc1w, fc1b, fc2w, fc2b):
    B, C, H, W, _ = x.shape
    x_ri = jnp.transpose(x, (0, 1, 4, 2, 3)).reshape(B, 2 * C, H, W)

    def conv(inp, w, b):
        dn = lax.conv_dimension_numbers(inp.shape, w.shape,
                                        ('NCHW', 'OIHW', 'NCHW'))
        y = lax.conv_general_dilated(inp, w, (1, 1), ((1, 1), (1, 1)),
                                     dimension_numbers=dn)
        return y + b[None, :, None, None]

    h = jnp.maximum(conv(x_ri, w1, b1), 0.0)
    out = conv(h, w2, b2)                                        # [B, 2C, H, W]
    out = jnp.transpose(out.reshape(B, C, 2, H, W), (0, 1, 3, 4, 2))

    amp = jnp.sqrt(out[..., 0] ** 2 + out[..., 1] ** 2)          # [B, C, H, W]
    pooled = jnp.mean(amp, axis=(2, 3))                          # [B, C]
    z = jnp.maximum(pooled @ fc1w.T + fc1b, 0.0)
    wgt = jax.nn.sigmoid(z @ fc2w.T + fc2b)                      # [B, C]
    out = out * wgt[:, :, None, None, None]
    return x + out


if __name__ == "__main__":
    # channels=8 so the channel-attention bottleneck (reduction=8) is non-degenerate.
    B, C, H, W = 2, 8, 16, 16
    R = max(C // 8, 1)

    key = jax.random.PRNGKey(0)
    ks = jax.random.split(key, 9)

    def uniform(k, shape, fan_in):
        bound = 1.0 / (fan_in ** 0.5)
        return jax.random.uniform(k, shape, jnp.float32, -bound, bound)

    x = jax.random.normal(ks[0], (B, C, H, W, 2), jnp.float32)
    w1 = uniform(ks[1], (C, 2 * C, KSIZE, KSIZE), 2 * C * KSIZE * KSIZE)
    b1 = uniform(ks[2], (C,), 2 * C * KSIZE * KSIZE)
    w2 = uniform(ks[3], (2 * C, C, KSIZE, KSIZE), C * KSIZE * KSIZE)
    b2 = uniform(ks[4], (2 * C,), C * KSIZE * KSIZE)
    fc1w = uniform(ks[5], (R, C), C)
    fc1b = uniform(ks[6], (R,), C)
    fc2w = uniform(ks[7], (C, R), R)
    fc2b = uniform(ks[8], (C,), R)

    out = rcab_forward(x, w1, b1, w2, b2, fc1w, fc1b, fc2w, fc2b)
    out = jax.block_until_ready(out)

    ref = _reference(x, w1, b1, w2, b2, fc1w, fc1b, fc2w, fc2b)
    assert out.shape == (B, C, H, W, 2), out.shape
    max_err = float(jnp.max(jnp.abs(out - ref)))
    assert jnp.allclose(out, ref, atol=1e-4, rtol=1e-4), max_err

    print("KERNEL_OK")
</pallas_src>

<mosaic_0001>
module attributes {stable_mosaic.version = 11 : i64} {
  func.func @_conv1_relu_kernel(%arg0: i32, %arg1: memref<144x512xf32, #tpu.memory_space<vmem>>, %arg2: memref<8x144xf32, #tpu.memory_space<vmem>>, %arg3: memref<8x1xf32, #tpu.memory_space<vmem>>, %arg4: memref<8x512xf32, #tpu.memory_space<vmem>>) attributes {dimension_semantics = [#tpu.dimension_semantics<arbitrary>], iteration_bounds = array<i64: 1>, scalar_prefetch = 0 : i64, scratch_operands = 0 : i64, tpu.core_type = #tpu.core_type<tc>, window_params = [{pipeline_mode = #tpu.pipeline_mode<synchronous>, transform_indices = @transform_0, window_bounds = array<i64: 144, 512>}, {pipeline_mode = #tpu.pipeline_mode<synchronous>, transform_indices = @transform_1, window_bounds = array<i64: 8, 144>}, {pipeline_mode = #tpu.pipeline_mode<synchronous>, transform_indices = @transform_2, window_bounds = array<i64: 8, 1>}, {pipeline_mode = #tpu.pipeline_mode<synchronous>, transform_indices = @transform_3, window_bounds = array<i64: 8, 512>}]} {
    %c0 = arith.constant 0 : index
    %c0_0 = arith.constant 0 : index
    %0 = vector.load %arg2[%c0, %c0_0] : memref<8x144xf32, #tpu.memory_space<vmem>>, vector<8x144xf32>
    %c0_1 = arith.constant 0 : index
    %c0_2 = arith.constant 0 : index
    %1 = vector.load %arg1[%c0_1, %c0_2] : memref<144x512xf32, #tpu.memory_space<vmem>>, vector<144x512xf32>
    %cst = arith.constant dense<0.000000e+00> : vector<8x512xf32>
    %2 = tpu.matmul %0, %1, %cst {dimension_numbers = #tpu.dot_dimension_numbers<[1], [0], [0], [1], [0, 0, 1, 1], [], []>} : vector<8x144xf32>, vector<144x512xf32>, vector<8x512xf32> -> vector<8x512xf32>
    %c0_3 = arith.constant 0 : index
    %c0_4 = arith.constant 0 : index
    %3 = vector.load %arg3[%c0_3, %c0_4] : memref<8x1xf32, #tpu.memory_space<vmem>>, vector<8x1xf32>
    %4 = vector.broadcast %3 : vector<8x1xf32> to vector<8x512xf32>
    %5 = arith.addf %2, %4 : vector<8x512xf32>
    %cst_5 = arith.constant 0.000000e+00 : f32
    %6 = vector.broadcast %cst_5 : f32 to vector<8x512xf32>
    %7 = arith.maximumf %5, %6 : vector<8x512xf32>
    %c0_6 = arith.constant 0 : index
    %c0_7 = arith.constant 0 : index
    %8 = vector.load %arg4[%c0_6, %c0_7] : memref<8x512xf32, #tpu.memory_space<vmem>>, vector<8x512xf32>
    tpu.vector_store %arg4[%c0_6, %c0_7], %7 {strides = array<i32>} : memref<8x512xf32, #tpu.memory_space<vmem>>, vector<8x512xf32>,
    return
  }
  func.func @transform_0(%arg0: i32) -> (i32, i32) {
    %c0_i32 = arith.constant 0 : i32
    %c0_i32_0 = arith.constant 0 : i32
    %c0_i32_1 = arith.constant 0 : i32
    return %c0_i32, %c0_i32_0 : i32, i32
  }
  func.func @transform_1(%arg0: i32) -> (i32, i32) {
    %c0_i32 = arith.constant 0 : i32
    %c0_i32_0 = arith.constant 0 : i32
    %c0_i32_1 = arith.constant 0 : i32
    return %c0_i32, %c0_i32_0 : i32, i32
  }
  func.func @transform_2(%arg0: i32) -> (i32, i32) {
    %c0_i32 = arith.constant 0 : i32
    %c0_i32_0 = arith.constant 0 : i32
    %c0_i32_1 = arith.constant 0 : i32
    return %c0_i32, %c0_i32_0 : i32, i32
  }
  func.func @transform_3(%arg0: i32) -> (i32, i32) {
    %c0_i32 = arith.constant 0 : i32
    %c0_i32_0 = arith.constant 0 : i32
    %c0_i32_1 = arith.constant 0 : i32
    return %c0_i32, %c0_i32_0 : i32, i32
  }
}

module attributes {stable_mosaic.version = 11 : i64} {
  func.func @_conv2_ca_residual_kernel(%arg0: i32, %arg1: memref<72x512xf32, #tpu.memory_space<vmem>>, %arg2: memref<16x72xf32, #tpu.memory_space<vmem>>, %arg3: memref<16x1xf32, #tpu.memory_space<vmem>>, %arg4: memref<8x8xf32, #tpu.memory_space<vmem>>, %arg5: memref<8x1xf32, #tpu.memory_space<vmem>>, %arg6: memref<8x8xf32, #tpu.memory_space<vmem>>, %arg7: memref<8x1xf32, #tpu.memory_space<vmem>>, %arg8: memref<512x8xf32, #tpu.memory_space<vmem>>, %arg9: memref<8x512xf32, #tpu.memory_space<vmem>>, %arg10: memref<16x512xf32, #tpu.memory_space<vmem>>, %arg11: memref<16x512xf32, #tpu.memory_space<vmem>>) attributes {dimension_semantics = [#tpu.dimension_semantics<arbitrary>], iteration_bounds = array<i64: 1>, scalar_prefetch = 0 : i64, scratch_operands = 0 : i64, tpu.core_type = #tpu.core_type<tc>, window_params = [{pipeline_mode = #tpu.pipeline_mode<synchronous>, transform_indices = @transform_0, window_bounds = array<i64: 72, 512>}, {pipeline_mode = #tpu.pipeline_mode<synchronous>, transform_indices = @transform_1, window_bounds = array<i64: 16, 72>}, {pipeline_mode = #tpu.pipeline_mode<synchronous>, transform_indices = @transform_2, window_bounds = array<i64: 16, 1>}, {pipeline_mode = #tpu.pipeline_mode<synchronous>, transform_indices = @transform_3, window_bounds = array<i64: 8, 8>}, {pipeline_mode = #tpu.pipeline_mode<synchronous>, transform_indices = @transform_4, window_bounds = array<i64: 8, 1>}, {pipeline_mode = #tpu.pipeline_mode<synchronous>, transform_indices = @transform_5, window_bounds = array<i64: 8, 8>}, {pipeline_mode = #tpu.pipeline_mode<synchronous>, transform_indices = @transform_6, window_bounds = array<i64: 8, 1>}, {pipeline_mode = #tpu.pipeline_mode<synchronous>, transform_indices = @transform_7, window_bounds = array<i64: 512, 8>}, {pipeline_mode = #tpu.pipeline_mode<synchronous>, transform_indices = @transform_8, window_bounds = array<i64: 8, 512>}, {pipeline_mode = #tpu.pipeline_mode<synchronous>, transform_indices = @transform_9, window_bounds = array<i64: 16, 512>}, {pipeline_mode = #tpu.pipeline_mode<synchronous>, transform_indices = @transform_10, window_bounds = array<i64: 16, 512>}]} {
    %c0 = arith.constant 0 : index
    %c0_0 = arith.constant 0 : index
    %0 = vector.load %arg2[%c0, %c0_0] : memref<16x72xf32, #tpu.memory_space<vmem>>, vector<16x72xf32>
    %c0_1 = arith.constant 0 : index
    %c0_2 = arith.constant 0 : index
    %1 = vector.load %arg1[%c0_1, %c0_2] : memref<72x512xf32, #tpu.memory_space<vmem>>, vector<72x512xf32>
    %cst = arith.constant dense<0.000000e+00> : vector<16x512xf32>
    %2 = tpu.matmul %0, %1, %cst {dimension_numbers = #tpu.dot_dimension_numbers<[1], [0], [0], [1], [0, 0, 1, 1], [], []>} : vector<16x72xf32>, vector<72x512xf32>, vector<16x512xf32> -> vector<16x512xf32>
    %c0_3 = arith.constant 0 : index
    %c0_4 = arith.constant 0 : index
    %3 = vector.load %arg3[%c0_3, %c0_4] : memref<16x1xf32, #tpu.memory_space<vmem>>, vector<16x1xf32>
    %4 = vector.broadcast %3 : vector<16x1xf32> to vector<16x512xf32>
    %5 = arith.addf %2, %4 : vector<16x512xf32>
    %6 = vector.extract_strided_slice %5 {offsets = [0, 0], sizes = [8, 512], strides = [1, 1]} : vector<16x512xf32> to vector<8x512xf32>
    %7 = vector.extract_strided_slice %5 {offsets = [8, 0], sizes = [8, 512], strides = [1, 1]} : vector<16x512xf32> to vector<8x512xf32>
    %8 = arith.mulf %6, %6 : vector<8x512xf32>
    %9 = arith.mulf %7, %7 : vector<8x512xf32>
    %10 = arith.addf %8, %9 : vector<8x512xf32>
    %11 = math.sqrt %10 : vector<8x512xf32>
    %c0_5 = arith.constant 0 : index
    %c0_6 = arith.constant 0 : index
    %12 = vector.load %arg8[%c0_5, %c0_6] : memref<512x8xf32, #tpu.memory_space<vmem>>, vector<512x8xf32>
    %cst_7 = arith.constant dense<0.000000e+00> : vector<8x8xf32>
    %13 = tpu.matmul %11, %12, %cst_7 {dimension_numbers = #tpu.dot_dimension_numbers<[1], [0], [0], [1], [0, 0, 1, 1], [], []>} : vector<8x512xf32>, vector<512x8xf32>, vector<8x8xf32> -> vector<8x8xf32>
    %cst_8 = arith.constant 3.906250e-03 : f32
    %14 = vector.broadcast %cst_8 : f32 to vector<8x8xf32>
    %15 = arith.mulf %13, %14 : vector<8x8xf32>
    %c0_9 = arith.constant 0 : index
    %c0_10 = arith.constant 0 : index
    %16 = vector.load %arg4[%c0_9, %c0_10] : memref<8x8xf32, #tpu.memory_space<vmem>>, vector<8x8xf32>
    %cst_11 = arith.constant dense<0.000000e+00> : vector<8x8xf32>
    %17 = tpu.matmul %16, %15, %cst_11 {dimension_numbers = #tpu.dot_dimension_numbers<[1], [0], [0], [1], [0, 0, 1, 1], [], []>} : vector<8x8xf32>, vector<8x8xf32>, vector<8x8xf32> -> vector<8x8xf32>
    %c0_12 = arith.constant 0 : index
    %c0_13 = arith.constant 0 : index
    %18 = vector.load %arg5[%c0_12, %c0_13] : memref<8x1xf32, #tpu.memory_space<vmem>>, vector<8x1xf32>
    %19 = vector.broadcast %18 : vector<8x1xf32> to vector<8x8xf32>
    %20 = arith.addf %17, %19 : vector<8x8xf32>
    %cst_14 = arith.constant 0.000000e+00 : f32
    %21 = vector.broadcast %cst_14 : f32 to vector<8x8xf32>
    %22 = arith.maximumf %20, %21 : vector<8x8xf32>
    %c0_15 = arith.constant 0 : index
    %c0_16 = arith.constant 0 : index
    %23 = vector.load %arg6[%c0_15, %c0_16] : memref<8x8xf32, #tpu.memory_space<vmem>>, vector<8x8xf32>
    %cst_17 = arith.constant dense<0.000000e+00> : vector<8x8xf32>
    %24 = tpu.matmul %23, %22, %cst_17 {dimension_numbers = #tpu.dot_dimension_numbers<[1], [0], [0], [1], [0, 0, 1, 1], [], []>} : vector<8x8xf32>, vector<8x8xf32>, vector<8x8xf32> -> vector<8x8xf32>
    %c0_18 = arith.constant 0 : index
    %c0_19 = arith.constant 0 : index
    %25 = vector.load %arg7[%c0_18, %c0_19] : memref<8x1xf32, #tpu.memory_space<vmem>>, vector<8x1xf32>
    %26 = vector.broadcast %25 : vector<8x1xf32> to vector<8x8xf32>
    %27 = arith.addf %24, %26 : vector<8x8xf32>
    %cst_20 = arith.constant 0.000000e+00 : f32
    %28 = vector.broadcast %cst_20 : f32 to vector<8x8xf32>
    %29 = arith.subf %28, %27 : vector<8x8xf32>
    %30 = math.exp %29 : vector<8x8xf32>
    %cst_21 = arith.constant 1.000000e+00 : f32
    %31 = vector.broadcast %cst_21 : f32 to vector<8x8xf32>
    %32 = arith.addf %31, %30 : vector<8x8xf32>
    %cst_22 = arith.constant 1.000000e+00 : f32
    %33 = vector.broadcast %cst_22 : f32 to vector<8x8xf32>
    %34 = arith.divf %33, %32 : vector<8x8xf32>
    %c0_23 = arith.constant 0 : index
    %c0_24 = arith.constant 0 : index
    %35 = vector.load %arg9[%c0_23, %c0_24] : memref<8x512xf32, #tpu.memory_space<vmem>>, vector<8x512xf32>
    %cst_25 = arith.constant dense<0.000000e+00> : vector<8x512xf32>
    %36 = tpu.matmul %34, %35, %cst_25 {dimension_numbers = #tpu.dot_dimension_numbers<[1], [0], [0], [1], [0, 0, 1, 1], [], []>} : vector<8x8xf32>, vector<8x512xf32>, vector<8x512xf32> -> vector<8x512xf32>
    %37 = tpu.concatenate %36, %36 in 0 : vector<8x512xf32>, vector<8x512xf32> -> vector<16x512xf32>
    %c0_26 = arith.constant 0 : index
    %c0_27 = arith.constant 0 : index
    %38 = vector.load %arg10[%c0_26, %c0_27] : memref<16x512xf32, #tpu.memory_space<vmem>>, vector<16x512xf32>
    %39 = arith.mulf %5, %37 : vector<16x512xf32>
    %40 = arith.addf %38, %39 : vector<16x512xf32>
    %c0_28 = arith.constant 0 : index
    %c0_29 = arith.constant 0 : index
    %41 = vector.load %arg11[%c0_28, %c0_29] : memref<16x512xf32, #tpu.memory_space<vmem>>, vector<16x512xf32>
    tpu.vector_store %arg11[%c0_28, %c0_29], %40 {strides = array<i32>} : memref<16x512xf32, #tpu.memory_space<vmem>>, vector<16x512xf32>,
    return
  }
  func.func @transform_0(%arg0: i32) -> (i32, i32) {
    %c0_i32 = arith.constant 0 : i32
    %c0_i32_0 = arith.constant 0 : i32
    %c0_i32_1 = arith.constant 0 : i32
    return %c0_i32, %c0_i32_0 : i32, i32
  }
  func.func @transform_1(%arg0: i32) -> (i32, i32) {
    %c0_i32 = arith.constant 0 : i32
    %c0_i32_0 = arith.constant 0 : i32
    %c0_i32_1 = arith.constant 0 : i32
    return %c0_i32, %c0_i32_0 : i32, i32
  }
  func.func @transform_2(%arg0: i32) -> (i32, i32) {
    %c0_i32 = arith.constant 0 : i32
    %c0_i32_0 = arith.constant 0 : i32
    %c0_i32_1 = arith.constant 0 : i32
    return %c0_i32, %c0_i32_0 : i32, i32
  }
  func.func @transform_3(%arg0: i32) -> (i32, i32) {
    %c0_i32 = arith.constant 0 : i32
    %c0_i32_0 = arith.constant 0 : i32
    %c0_i32_1 = arith.constant 0 : i32
    return %c0_i32, %c0_i32_0 : i32, i32
  }
  func.func @transform_4(%arg0: i32) -> (i32, i32) {
    %c0_i32 = arith.constant 0 : i32
    %c0_i32_0 = arith.constant 0 : i32
    %c0_i32_1 = arith.constant 0 : i32
    return %c0_i32, %c0_i32_0 : i32, i32
  }
  func.func @transform_5(%arg0: i32) -> (i32, i32) {
    %c0_i32 = arith.constant 0 : i32
    %c0_i32_0 = arith.constant 0 : i32
    %c0_i32_1 = arith.constant 0 : i32
    return %c0_i32, %c0_i32_0 : i32, i32
  }
  func.func @transform_6(%arg0: i32) -> (i32, i32) {
    %c0_i32 = arith.constant 0 : i32
    %c0_i32_0 = arith.constant 0 : i32
    %c0_i32_1 = arith.constant 0 : i32
    return %c0_i32, %c0_i32_0 : i32, i32
  }
  func.func @transform_7(%arg0: i32) -> (i32, i32) {
    %c0_i32 = arith.constant 0 : i32
    %c0_i32_0 = arith.constant 0 : i32
    %c0_i32_1 = arith.constant 0 : i32
    return %c0_i32, %c0_i32_0 : i32, i32
  }
  func.func @transform_8(%arg0: i32) -> (i32, i32) {
    %c0_i32 = arith.constant 0 : i32
    %c0_i32_0 = arith.constant 0 : i32
    %c0_i32_1 = arith.constant 0 : i32
    return %c0_i32, %c0_i32_0 : i32, i32
  }
  func.func @transform_9(%arg0: i32) -> (i32, i32) {
    %c0_i32 = arith.constant 0 : i32
    %c0_i32_0 = arith.constant 0 : i32
    %c0_i32_1 = arith.constant 0 : i32
    return %c0_i32, %c0_i32_0 : i32, i32
  }
  func.func @transform_10(%arg0: i32) -> (i32, i32) {
    %c0_i32 = arith.constant 0 : i32
    %c0_i32_0 = arith.constant 0 : i32
    %c0_i32_1 = arith.constant 0 : i32
    return %c0_i32, %c0_i32_0 : i32, i32
  }
}

</mosaic_0001>

<llo_original>
// kernel: rcab_forward.2
$region0: #{rcab_forward.2}
  #allocation0 [shape = 'u32[]', space=smem, size = 0x4, offset = 0x4, fixed_abs, tag = 'smem constant byte address 0x4 - core index']
  #allocation1 [shape = 'u32[144,128]{1,0:T(1,128)}', space=vmem, size = 0x12000, scoped, tag = 'internal scratch']
  %s0 = inlined_call_operand.vmem [shape: f32[144,512], index: 0, kind: input, shape index: {}]
  %s1 = inlined_call_operand.vmem [shape: f32[8,144], index: 1, kind: input, shape index: {}]
  %s2 = inlined_call_operand.vmem [shape: f32[8,1], index: 2, kind: input, shape index: {}]
  %s3 = inlined_call_operand.vmem [shape: f32[8,512], index: 3, kind: output, shape index: {}]
  %s4 = sld [smem:[#allocation0]]
  $region22: #{rcab_forward.2} parent=0
    _
  %s6 = ssub.s32 1, %s4
  %s7 = scalar_select 0, %s6, %s4
  // Predicated region
  $region2: #{rcab_forward.2} parent=0 // pred_check
    _
  $region3: #{rcab_forward.2} parent=0 // pred_check_branch
    %9 = sbr.rel (0) target = $region5
  $region4: #{rcab_forward.2} parent=0 // pred_region
    _
  $region5: #{rcab_forward.2} parent=0 // pred_fallthru
    _
  // Predicated region
  $region6: #{rcab_forward.2} parent=0 // pred_check
    _
  $region7: #{rcab_forward.2} parent=0 // pred_check_branch
    %11 = sbr.rel (0) target = $region9
  $region8: #{rcab_forward.2} parent=0 // pred_region
    _
  $region9: #{rcab_forward.2} parent=0 // pred_fallthru
    _
  // Predicated region
  $region10: #{rcab_forward.2} parent=0 // pred_check
    _
  $region11: #{rcab_forward.2} parent=0 // pred_check_branch
    %13 = sbr.rel (0) target = $region13
  $region12: #{rcab_forward.2} parent=0 // pred_region
    _
  $region13: #{rcab_forward.2} parent=0 // pred_fallthru
    _
  %v14 = vld [vmem:[%s1] sm:$0xff]
  %v15 = vld [vmem:[%s1 + $0x8] sm:$0xff]
  %v16 = vld [vmem:[%s0] sm:$0xff]
  %v17 = vld [vmem:[%s0 + $0x8] sm:$0xff]
  %v18 = vld [vmem:[%s0 + $0x10] sm:$0xff]
  %v19 = vld [vmem:[%s0 + $0x18] sm:$0xff]
  %v20 = vld [vmem:[%s0 + $0x20] sm:$0xff]
  %v21 = vld [vmem:[%s0 + $0x28] sm:$0xff]
  %v22 = vld [vmem:[%s0 + $0x30] sm:$0xff]
  %v23 = vld [vmem:[%s0 + $0x38] sm:$0xff]
  %v24 = vld [vmem:[%s0 + $0x40] sm:$0xff]
  %v25 = vld [vmem:[%s0 + $0x48] sm:$0xff]
  %v26 = vld [vmem:[%s0 + $0x50] sm:$0xff]
  %v27 = vld [vmem:[%s0 + $0x58] sm:$0xff]
  %v28 = vld [vmem:[%s0 + $0x60] sm:$0xff]
  %v29 = vld [vmem:[%s0 + $0x68] sm:$0xff]
  %v30 = vld [vmem:[%s0 + $0x70] sm:$0xff]
  %v31 = vld [vmem:[%s0 + $0x78] sm:$0xff]
  %v32 = vld [vmem:[%s0 + $0x80] sm:$0xff]
  %v33 = vld [vmem:[%s0 + $0x88] sm:$0xff]
  %v34 = vld [vmem:[%s0 + $0x90] sm:$0xff]
  %v35 = vld [vmem:[%s0 + $0x98] sm:$0xff]
  %v36 = vld [vmem:[%s0 + $0xa0] sm:$0xff]
  %v37 = vld [vmem:[%s0 + $0xa8] sm:$0xff]
  %v38 = vld [vmem:[%s0 + $0xb0] sm:$0xff]
  %v39 = vld [vmem:[%s0 + $0xb8] sm:$0xff]
  %v40 = vld [vmem:[%s0 + $0xc0] sm:$0xff]
  %v41 = vld [vmem:[%s0 + $0xc8] sm:$0xff]
  %v42 = vld [vmem:[%s0 + $0xd0] sm:$0xff]
  %v43 = vld [vmem:[%s0 + $0xd8] sm:$0xff]
  %v44 = vld [vmem:[%s0 + $0xe0] sm:$0xff]
  %v45 = vld [vmem:[%s0 + $0xe8] sm:$0xff]
  %v46 = vld [vmem:[%s0 + $0xf0] sm:$0xff]
  %v47 = vld [vmem:[%s0 + $0xf8] sm:$0xff]
  %v48 = vld [vmem:[%s0 + $0x100] sm:$0xff]
  %v49 = vld [vmem:[%s0 + $0x108] sm:$0xff]
  %v50 = vld [vmem:[%s0 + $0x110] sm:$0xff]
  %v51 = vld [vmem:[%s0 + $0x118] sm:$0xff]
  %v52 = vld [vmem:[%s0 + $0x120] sm:$0xff]
  %v53 = vld [vmem:[%s0 + $0x128] sm:$0xff]
  %v54 = vld [vmem:[%s0 + $0x130] sm:$0xff]
  %v55 = vld [vmem:[%s0 + $0x138] sm:$0xff]
  %v56 = vld [vmem:[%s0 + $0x140] sm:$0xff]
  %v57 = vld [vmem:[%s0 + $0x148] sm:$0xff]
  %v58 = vld [vmem:[%s0 + $0x150] sm:$0xff]
  %v59 = vld [vmem:[%s0 + $0x158] sm:$0xff]
  %v60 = vld [vmem:[%s0 + $0x160] sm:$0xff]
  %v61 = vld [vmem:[%s0 + $0x168] sm:$0xff]
  %v62 = vld [vmem:[%s0 + $0x170] sm:$0xff]
  %v63 = vld [vmem:[%s0 + $0x178] sm:$0xff]
  %v64 = vld [vmem:[%s0 + $0x180] sm:$0xff]
  %v65 = vld [vmem:[%s0 + $0x188] sm:$0xff]
  %v66 = vld [vmem:[%s0 + $0x190] sm:$0xff]
  %v67 = vld [vmem:[%s0 + $0x198] sm:$0xff]
  %v68 = vld [vmem:[%s0 + $0x1a0] sm:$0xff]
  %v69 = vld [vmem:[%s0 + $0x1a8] sm:$0xff]
  %v70 = vld [vmem:[%s0 + $0x1b0] sm:$0xff]
  %v71 = vld [vmem:[%s0 + $0x1b8] sm:$0xff]
  %v72 = vld [vmem:[%s0 + $0x1c0] sm:$0xff]
  %v73 = vld [vmem:[%s0 + $0x1c8] sm:$0xff]
  %v74 = vld [vmem:[%s0 + $0x1d0] sm:$0xff]
  %v75 = vld [vmem:[%s0 + $0x1d8] sm:$0xff]
  %v76 = vld [vmem:[%s0 + $0x1e0] sm:$0xff]
  %v77 = vld [vmem:[%s0 + $0x1e8] sm:$0xff]
  %v78 = vld [vmem:[%s0 + $0x1f0] sm:$0xff]
  %v79 = vld [vmem:[%s0 + $0x1f8] sm:$0xff]
  %v80 = vld [vmem:[%s0 + $0x200] sm:$0xff]
  %v81 = vld [vmem:[%s0 + $0x208] sm:$0xff]
  %v82 = vld [vmem:[%s0 + $0x210] sm:$0xff]
  %v83 = vld [vmem:[%s0 + $0x218] sm:$0xff]
  %v84 = vld [vmem:[%s0 + $0x220] sm:$0xff]
  %v85 = vld [vmem:[%s0 + $0x228] sm:$0xff]
  %v86 = vld [vmem:[%s0 + $0x230] sm:$0xff]
  %v87 = vld [vmem:[%s0 + $0x238] sm:$0xff]
  %v88 = vld [vmem:[%s2] sm:$0xff]
  %90 = vset.pattern.permute.xlu0 0
  %91 = vperm.xlu0 %90, %v88
  %v92 = vpop.permute.xlu0 %91
  %vm94 = vcmask 130048
  %v96 = vsel %vm94, %v15, 0
  %98 = vmatprep.subr.mxu0 %v77
  %99 = vmatpush1.msra.mxu0 %v76
  %100 = vmatprep.subr.mxu0 %v73
  %101 = vmatpush1.msra.mxu0 %v72
  %102 = vmatprep.subr.mxu0 %v69
  %103 = vmatpush1.msra.mxu0 %v68
  %104 = vmatprep.subr.mxu0 %v65
  %105 = vmatpush1.msra.mxu0 %v64
  %106 = vmatprep.subr.mxu0 %v61
  %107 = vmatpush1.msra.mxu0 %v60
  %108 = vmatprep.subr.mxu0 %v57
  %109 = vmatpush1.msra.mxu0 %v56
  %110 = vmatprep.subr.mxu0 %v53
  %111 = vmatpush1.msra.mxu0 %v52
  %112 = vmatprep.subr.mxu0 %v49
  %113 = vmatpush1.msra.mxu0 %v48
  %114 = vmatprep.subr.mxu0 %v45
  %115 = vmatpush1.msra.mxu0 %v44
  %116 = vmatprep.subr.mxu0 %v41
  %117 = vmatpush1.msra.mxu0 %v40
  %118 = vmatprep.subr.mxu0 %v37
  %119 = vmatpush1.msra.mxu0 %v36
  %120 = vmatprep.subr.mxu0 %v33
  %121 = vmatpush1.msra.mxu0 %v32
  %122 = vmatprep.subr.mxu0 %v29
  %123 = vmatpush1.msra.mxu0 %v28
  %124 = vmatprep.subr.mxu0 %v25
  %125 = vmatpush1.msra.mxu0 %v24
  %126 = vmatprep.subr.mxu0 %v21
  %127 = vmatpush1.msra.mxu0 %v20
  %128 = vmatprep.subr.mxu0 %v17
  %129 = vmatpush1.msra.mxu0 %v16
  %130 = vmatprep.subr.mxu0 0.0
  %131 = vmatpush2.msra.mxu0 0.0
  %132 = vmatprep.subr.mxu0 0.0
  %133 = vmatpush2.msra.mxu0 0.0
  %134 = vmatprep.subr.mxu0 0.0
  %135 = vmatpush2.msra.mxu0 0.0
  %136 = vmatprep.subr.mxu0 0.0
  %137 = vmatpush2.msra.mxu0 0.0
  %138 = vmatprep.subr.mxu0 0.0
  %139 = vmatpush2.msra.mxu0 0.0
  %140 = vmatprep.subr.mxu0 0.0
  %141 = vmatpush2.msra.mxu0 0.0
  %142 = vmatprep.subr.mxu0 0.0
  %143 = vmatpush2.msra.mxu0 0.0
  %144 = vmatprep.subr.mxu0 0.0
  %145 = vmatpush2.msra.mxu0 0.0
  %146 = vmatprep.subr.mxu0 0.0
  %147 = vmatpush2.msra.mxu0 0.0
  %148 = vmatprep.subr.mxu0 0.0
  %149 = vmatpush2.msra.mxu0 0.0
  %150 = vmatprep.subr.mxu0 0.0
  %151 = vmatpush2.msra.mxu0 0.0
  %152 = vmatprep.subr.mxu0 0.0
  %153 = vmatpush2.msra.mxu0 0.0
  %154 = vmatprep.subr.mxu0 0.0
  %155 = vmatpush2.msra.mxu0 0.0
  %156 = vmatprep.subr.mxu0 0.0
  %157 = vmatpush2.msra.mxu0 0.0
  %158 = vmatprep.subr.mxu0 %v85
  %159 = vmatpush2.msra.mxu0 %v84
  %160 = vmatprep.subr.mxu0 %v81
  %161 = vmatpush2.msra.mxu0 %v80
  %162 = vmatprep.mubr.f32.mxu0 %v96
  %163 = vmatmul.mubr.f32.gmra.mxu0 %v14
  %v164 = vpop.f32.mrf.mxu0
  %v165 = vadd.f32 %v92, %v164
  %v166 = vpop.f32.mrf.mxu0
  %v167 = vadd.f32 %v92, %v166
  %168 = vdwg.mxu0
  %169 = vmatprep.subr.mxu0 %v79
  %170 = vmatpush1.msra.mxu0 %v78
  %171 = vmatprep.subr.mxu0 %v75
  %172 = vmatpush1.msra.mxu0 %v74
  %173 = vmatprep.subr.mxu0 %v71
  %174 = vmatpush1.msra.mxu0 %v70
  %175 = vmatprep.subr.mxu0 %v67
  %176 = vmatpush1.msra.mxu0 %v66
  %177 = vmatprep.subr.mxu0 %v63
  %178 = vmatpush1.msra.mxu0 %v62
  %179 = vmatprep.subr.mxu0 %v59
  %180 = vmatpush1.msra.mxu0 %v58
  %181 = vmatprep.subr.mxu0 %v55
  %182 = vmatpush1.msra.mxu0 %v54
  %183 = vmatprep.subr.mxu0 %v51
  %184 = vmatpush1.msra.mxu0 %v50
  %185 = vmatprep.subr.mxu0 %v47
  %186 = vmatpush1.msra.mxu0 %v46
  %187 = vmatprep.subr.mxu0 %v43
  %188 = vmatpush1.msra.mxu0 %v42
  %189 = vmatprep.subr.mxu0 %v39
  %190 = vmatpush1.msra.mxu0 %v38
  %191 = vmatprep.subr.mxu0 %v35
  %192 = vmatpush1.msra.mxu0 %v34
  %193 = vmatprep.subr.mxu0 %v31
  %194 = vmatpush1.msra.mxu0 %v30
  %195 = vmatprep.subr.mxu0 %v27
  %196 = vmatpush1.msra.mxu0 %v26
  %197 = vmatprep.subr.mxu0 %v23
  %198 = vmatpush1.msra.mxu0 %v22
  %199 = vmatprep.subr.mxu0 %v19
  %200 = vmatpush1.msra.mxu0 %v18
  %201 = vmatprep.subr.mxu0 0.0
  %202 = vmatpush2.msra.mxu0 0.0
  %203 = vmatprep.subr.mxu0 0.0
  %204 = vmatpush2.msra.mxu0 0.0
  %205 = vmatprep.subr.mxu0 0.0
  %206 = vmatpush2.msra.mxu0 0.0
  %207 = vmatprep.subr.mxu0 0.0
  %208 = vmatpush2.msra.mxu0 0.0
  %209 = vmatprep.subr.mxu0 0.0
  %210 = vmatpush2.msra.mxu0 0.0
  %211 = vmatprep.subr.mxu0 0.0
  %212 = vmatpush2.msra.mxu0 0.0
  %213 = vmatprep.subr.mxu0 0.0
  %214 = vmatpush2.msra.mxu0 0.0
  %215 = vmatprep.subr.mxu0 0.0
  %216 = vmatpush2.msra.mxu0 0.0
  %217 = vmatprep.subr.mxu0 0.0
  %218 = vmatpush2.msra.mxu0 0.0
  %219 = vmatprep.subr.mxu0 0.0
  %220 = vmatpush2.msra.mxu0 0.0
  %221 = vmatprep.subr.mxu0 0.0
  %222 = vmatpush2.msra.mxu0 0.0
  %223 = vmatprep.subr.mxu0 0.0
  %224 = vmatpush2.msra.mxu0 0.0
  %225 = vmatprep.subr.mxu0 0.0
  %226 = vmatpush2.msra.mxu0 0.0
  %227 = vmatprep.subr.mxu0 0.0
  %228 = vmatpush2.msra.mxu0 0.0
  %229 = vmatprep.subr.mxu0 %v87
  %230 = vmatpush2.msra.mxu0 %v86
  %231 = vmatprep.subr.mxu0 %v83
  %232 = vmatpush2.msra.mxu0 %v82
  %233 = vmatprep.mubr.f32.mxu0 %v96
  %234 = vmatmul.mubr.f32.gmra.mxu0 %v14
  %v235 = vpop.f32.mrf.mxu0
  %v236 = vadd.f32 %v92, %v235
  %v237 = vpop.f32.mrf.mxu0
  %v238 = vadd.f32 %v92, %v237
  %239 = vdwg.mxu0
  %v240 = vmax.f32 %v165, 0.0
  %v241 = vmax.f32 %v167, 0.0
  %v242 = vmax.f32 %v236, 0.0
  %v243 = vmax.f32 %v238, 0.0
  %244 = vst [vmem:[%s3] sm:$0xff] %v240
  %245 = vst [vmem:[%s3 + $0x8] sm:$0xff] %v241
  %246 = vst [vmem:[%s3 + $0x10] sm:$0xff] %v242
  %247 = vst [vmem:[%s3 + $0x18] sm:$0xff] %v243
  // Predicated region
  $region14: #{rcab_forward.2} parent=0 // pred_check
    _
  $region15: #{rcab_forward.2} parent=0 // pred_check_branch
    %249 = sbr.rel (0) target = $region17
  $region16: #{rcab_forward.2} parent=0 // pred_region
    _
  $region17: #{rcab_forward.2} parent=0 // pred_fallthru
    _
  // Predicated region
  $region18: #{rcab_forward.2} parent=0 // pred_check
    _
  $region19: #{rcab_forward.2} parent=0 // pred_check_branch
    %251 = sbr.rel (0) target = $region21
  $region20: #{rcab_forward.2} parent=0 // pred_region
    _
  $region21: #{rcab_forward.2} parent=0 // pred_fallthru
    _

// kernel: rcab_forward.3
$region0: #{rcab_forward.3}
  #allocation0 [shape = 'u32[]', space=smem, size = 0x4, offset = 0x4, fixed_abs, tag = 'smem constant byte address 0x4 - core index']
  #allocation1 [shape = 'u32[144,128]{1,0:T(1,128)}', space=vmem, size = 0x12000, scoped, tag = 'internal scratch']
  %s0 = inlined_call_operand.vmem [shape: f32[72,512], index: 0, kind: input, shape index: {}]
  %s1 = inlined_call_operand.vmem [shape: f32[16,72], index: 1, kind: input, shape index: {}]
  %s2 = inlined_call_operand.vmem [shape: f32[16,1], index: 2, kind: input, shape index: {}]
  %s3 = inlined_call_operand.vmem [shape: f32[8,8], index: 3, kind: input, shape index: {}]
  %s4 = inlined_call_operand.vmem [shape: f32[8,1], index: 4, kind: input, shape index: {}]
  %s5 = inlined_call_operand.vmem [shape: f32[8,8], index: 5, kind: input, shape index: {}]
  %s6 = inlined_call_operand.vmem [shape: f32[8,1], index: 6, kind: input, shape index: {}]
  %s7 = inlined_call_operand.vmem [shape: f32[512,8], index: 7, kind: input, shape index: {}]
  %s8 = inlined_call_operand.vmem [shape: f32[8,512], index: 8, kind: input, shape index: {}]
  %s9 = inlined_call_operand.vmem [shape: f32[16,512], index: 9, kind: input, shape index: {}]
  %s10 = inlined_call_operand.vmem [shape: f32[16,512], index: 10, kind: output, shape index: {}]
  %s11 = sld [smem:[#allocation0]]
  $region50: #{rcab_forward.3} parent=0
    _
  %s13 = ssub.s32 1, %s11
  %s14 = scalar_select 0, %s13, %s11
  // Predicated region
  $region2: #{rcab_forward.3} parent=0 // pred_check
    _
  $region3: #{rcab_forward.3} parent=0 // pred_check_branch
    %16 = sbr.rel (0) target = $region5
  $region4: #{rcab_forward.3} parent=0 // pred_region
    _
  $region5: #{rcab_forward.3} parent=0 // pred_fallthru
    _
  // Predicated region
  $region6: #{rcab_forward.3} parent=0 // pred_check
    _
  $region7: #{rcab_forward.3} parent=0 // pred_check_branch
    %18 = sbr.rel (0) target = $region9
  $region8: #{rcab_forward.3} parent=0 // pred_region
    _
  $region9: #{rcab_forward.3} parent=0 // pred_fallthru
    _
  // Predicated region
  $region10: #{rcab_forward.3} parent=0 // pred_check
    _
  $region11: #{rcab_forward.3} parent=0 // pred_check_branch
    %20 = sbr.rel (0) target = $region13
  $region12: #{rcab_forward.3} parent=0 // pred_region
    _
  $region13: #{rcab_forward.3} parent=0 // pred_fallthru
    _
  // Predicated region
  $region14: #{rcab_forward.3} parent=0 // pred_check
    _
  $region15: #{rcab_forward.3} parent=0 // pred_check_branch
    %22 = sbr.rel (0) target = $region17
  $region16: #{rcab_forward.3} parent=0 // pred_region
    _
  $region17: #{rcab_forward.3} parent=0 // pred_fallthru
    _
  // Predicated region
  $region18: #{rcab_forward.3} parent=0 // pred_check
    _
  $region19: #{rcab_forward.3} parent=0 // pred_check_branch
    %24 = sbr.rel (0) target = $region21
  $region20: #{rcab_forward.3} parent=0 // pred_region
    _
  $region21: #{rcab_forward.3} parent=0 // pred_fallthru
    _
  // Predicated region
  $region22: #{rcab_forward.3} parent=0 // pred_check
    _
  $region23: #{rcab_forward.3} parent=0 // pred_check_branch
    %26 = sbr.rel (0) target = $region25
  $region24: #{rcab_forward.3} parent=0 // pred_region
    _
  $region25: #{rcab_forward.3} parent=0 // pred_fallthru
    _
  // Predicated region
  $region26: #{rcab_forward.3} parent=0 // pred_check
    _
  $region27: #{rcab_forward.3} parent=0 // pred_check_branch
    %28 = sbr.rel (0) target = $region29
  $region28: #{rcab_forward.3} parent=0 // pred_region
    _
  $region29: #{rcab_forward.3} parent=0 // pred_fallthru
    _
  // Predicated region
  $region30: #{rcab_forward.3} parent=0 // pred_check
    _
  $region31: #{rcab_forward.3} parent=0 // pred_check_branch
    %30 = sbr.rel (0) target = $region33
  $region32: #{rcab_forward.3} parent=0 // pred_region
    _
  $region33: #{rcab_forward.3} parent=0 // pred_fallthru
    _
  // Predicated region
  $region34: #{rcab_forward.3} parent=0 // pred_check
    _
  $region35: #{rcab_forward.3} parent=0 // pred_check_branch
    %32 = sbr.rel (0) target = $region37
  $region36: #{rcab_forward.3} parent=0 // pred_region
    _
  $region37: #{rcab_forward.3} parent=0 // pred_fallthru
    _
  // Predicated region
  $region38: #{rcab_forward.3} parent=0 // pred_check
    _
  $region39: #{rcab_forward.3} parent=0 // pred_check_branch
    %34 = sbr.rel (0) target = $region41
  $region40: #{rcab_forward.3} parent=0 // pred_region
    _
  $region41: #{rcab_forward.3} parent=0 // pred_fallthru
    _
  %v35 = vld [vmem:[%s1] sm:$0xff]
  %v36 = vld [vmem:[%s1 + $0x8] sm:$0xff]
  %v37 = vld [vmem:[%s0] sm:$0xff]
  %v38 = vld [vmem:[%s0 + $0x8] sm:$0xff]
  %v39 = vld [vmem:[%s0 + $0x10] sm:$0xff]
  %v40 = vld [vmem:[%s0 + $0x18] sm:$0xff]
  %v41 = vld [vmem:[%s0 + $0x20] sm:$0xff]
  %v42 = vld [vmem:[%s0 + $0x28] sm:$0xff]
  %v43 = vld [vmem:[%s0 + $0x30] sm:$0xff]
  %v44 = vld [vmem:[%s0 + $0x38] sm:$0xff]
  %v45 = vld [vmem:[%s0 + $0x40] sm:$0xff]
  %v46 = vld [vmem:[%s0 + $0x48] sm:$0xff]
  %v47 = vld [vmem:[%s0 + $0x50] sm:$0xff]
  %v48 = vld [vmem:[%s0 + $0x58] sm:$0xff]
  %v49 = vld [vmem:[%s0 + $0x60] sm:$0xff]
  %v50 = vld [vmem:[%s0 + $0x68] sm:$0xff]
  %v51 = vld [vmem:[%s0 + $0x70] sm:$0xff]
  %v52 = vld [vmem:[%s0 + $0x78] sm:$0xff]
  %v53 = vld [vmem:[%s0 + $0x80] sm:$0xff]
  %v54 = vld [vmem:[%s0 + $0x88] sm:$0xff]
  %v55 = vld [vmem:[%s0 + $0x90] sm:$0xff]
  %v56 = vld [vmem:[%s0 + $0x98] sm:$0xff]
  %v57 = vld [vmem:[%s0 + $0xa0] sm:$0xff]
  %v58 = vld [vmem:[%s0 + $0xa8] sm:$0xff]
  %v59 = vld [vmem:[%s0 + $0xb0] sm:$0xff]
  %v60 = vld [vmem:[%s0 + $0xb8] sm:$0xff]
  %v61 = vld [vmem:[%s0 + $0xc0] sm:$0xff]
  %v62 = vld [vmem:[%s0 + $0xc8] sm:$0xff]
  %v63 = vld [vmem:[%s0 + $0xd0] sm:$0xff]
  %v64 = vld [vmem:[%s0 + $0xd8] sm:$0xff]
  %v65 = vld [vmem:[%s0 + $0xe0] sm:$0xff]
  %v66 = vld [vmem:[%s0 + $0xe8] sm:$0xff]
  %v67 = vld [vmem:[%s0 + $0xf0] sm:$0xff]
  %v68 = vld [vmem:[%s0 + $0xf8] sm:$0xff]
  %v69 = vld [vmem:[%s0 + $0x100] sm:$0xff]
  %v70 = vld [vmem:[%s0 + $0x108] sm:$0xff]
  %v71 = vld [vmem:[%s0 + $0x110] sm:$0xff]
  %v72 = vld [vmem:[%s0 + $0x118] sm:$0xff]
  %v73 = vld [vmem:[%s2] sm:$0xff]
  %v74 = vld [vmem:[%s2 + $0x8] sm:$0xff]
  %76 = vset.pattern.permute.xlu0 0
  %77 = vperm.xlu0 %76, %v73
  %v78 = vpop.permute.xlu0 %77
  %81 = vset.pattern.permute.xlu0 0
  %82 = vperm.xlu0 %81, %v74
  %v83 = vpop.permute.xlu0 %82
  %vm85 = vcmask 588800
  %v87 = vsel %vm85, %v35, 0
  %v90 = vsel %vm85, %v36, 0
  %92 = vmatprep.subr.mxu0 0.0
  %93 = vmatpush1.msra.mxu0 0.0
  %94 = vmatprep.subr.mxu0 0.0
  %95 = vmatpush1.msra.mxu0 0.0
  %96 = vmatprep.subr.mxu0 0.0
  %97 = vmatpush1.msra.mxu0 0.0
  %98 = vmatprep.subr.mxu0 0.0
  %99 = vmatpush1.msra.mxu0 0.0
  %100 = vmatprep.subr.mxu0 0.0
  %101 = vmatpush1.msra.mxu0 0.0
  %102 = vmatprep.subr.mxu0 0.0
  %103 = vmatpush1.msra.mxu0 0.0
  %104 = vmatprep.subr.mxu0 0.0
  %105 = vmatpush1.msra.mxu0 0.0
  %106 = vmatprep.subr.mxu0 %v70
  %107 = vmatpush1.msra.mxu0 %v69
  %108 = vmatprep.subr.mxu0 %v66
  %109 = vmatpush1.msra.mxu0 %v65
  %110 = vmatprep.subr.mxu0 %v62
  %111 = vmatpush1.msra.mxu0 %v61
  %112 = vmatprep.subr.mxu0 %v58
  %113 = vmatpush1.msra.mxu0 %v57
  %114 = vmatprep.subr.mxu0 %v54
  %115 = vmatpush1.msra.mxu0 %v53
  %116 = vmatprep.subr.mxu0 %v50
  %117 = vmatpush1.msra.mxu0 %v49
  %118 = vmatprep.subr.mxu0 %v46
  %119 = vmatpush1.msra.mxu0 %v45
  %120 = vmatprep.subr.mxu0 %v42
  %121 = vmatpush1.msra.mxu0 %v41
  %122 = vmatprep.subr.mxu0 %v38
  %123 = vmatpush1.msra.mxu0 %v37
  %124 = vmatprep.subr.mxu0 0.0
  %125 = vmatpush2.msra.mxu0 0.0
  %126 = vmatprep.subr.mxu0 0.0
  %127 = vmatpush2.msra.mxu0 0.0
  %128 = vmatprep.subr.mxu0 0.0
  %129 = vmatpush2.msra.mxu0 0.0
  %130 = vmatprep.subr.mxu0 0.0
  %131 = vmatpush2.msra.mxu0 0.0
  %132 = vmatprep.subr.mxu0 0.0
  %133 = vmatpush2.msra.mxu0 0.0
  %134 = vmatprep.subr.mxu0 0.0
  %135 = vmatpush2.msra.mxu0 0.0
  %136 = vmatprep.subr.mxu0 0.0
  %137 = vmatpush2.msra.mxu0 0.0
  %138 = vmatprep.subr.mxu0 0.0
  %139 = vmatpush2.msra.mxu0 0.0
  %140 = vmatprep.subr.mxu0 0.0
  %141 = vmatpush2.msra.mxu0 0.0
  %142 = vmatprep.subr.mxu0 0.0
  %143 = vmatpush2.msra.mxu0 0.0
  %144 = vmatprep.subr.mxu0 0.0
  %145 = vmatpush2.msra.mxu0 0.0
  %146 = vmatprep.subr.mxu0 0.0
  %147 = vmatpush2.msra.mxu0 0.0
  %148 = vmatprep.subr.mxu0 0.0
  %149 = vmatpush2.msra.mxu0 0.0
  %150 = vmatprep.subr.mxu0 0.0
  %151 = vmatpush2.msra.mxu0 0.0
  %152 = vmatprep.subr.mxu0 0.0
  %153 = vmatpush2.msra.mxu0 0.0
  %154 = vmatprep.subr.mxu0 0.0
  %155 = vmatpush2.msra.mxu0 0.0
  %156 = vmatprep.mubr.f32.mxu0 0.0
  %157 = vmatmul.mubr.f32.gmra.mxu0 %v87
  %v158 = vpop.f32.mrf.mxu0
  %v159 = vadd.f32 %v78, %v158
  %v160 = vpop.f32.mrf.mxu0
  %v161 = vadd.f32 %v78, %v160
  %162 = vmatprep.mubr.f32.mxu0 0.0
  %163 = vmatmul.mubr.f32.gmra.mxu0 %v90
  %v164 = vpop.f32.mrf.mxu0
  %v165 = vadd.f32 %v83, %v164
  %v166 = vpop.f32.mrf.mxu0
  %v167 = vadd.f32 %v83, %v166
  %168 = vdwg.mxu0
  %169 = vmatprep.subr.mxu0 0.0
  %170 = vmatpush1.msra.mxu0 0.0
  %171 = vmatprep.subr.mxu0 0.0
  %172 = vmatpush1.msra.mxu0 0.0
  %173 = vmatprep.subr.mxu0 0.0
  %174 = vmatpush1.msra.mxu0 0.0
  %175 = vmatprep.subr.mxu0 0.0
  %176 = vmatpush1.msra.mxu0 0.0
  %177 = vmatprep.subr.mxu0 0.0
  %178 = vmatpush1.msra.mxu0 0.0
  %179 = vmatprep.subr.mxu0 0.0
  %180 = vmatpush1.msra.mxu0 0.0
  %181 = vmatprep.subr.mxu0 0.0
  %182 = vmatpush1.msra.mxu0 0.0
  %183 = vmatprep.subr.mxu0 %v72
  %184 = vmatpush1.msra.mxu0 %v71
  %185 = vmatprep.subr.mxu0 %v68
  %186 = vmatpush1.msra.mxu0 %v67
  %187 = vmatprep.subr.mxu0 %v64
  %188 = vmatpush1.msra.mxu0 %v63
  %189 = vmatprep.subr.mxu0 %v60
  %190 = vmatpush1.msra.mxu0 %v59
  %191 = vmatprep.subr.mxu0 %v56
  %192 = vmatpush1.msra.mxu0 %v55
  %193 = vmatprep.subr.mxu0 %v52
  %194 = vmatpush1.msra.mxu0 %v51
  %195 = vmatprep.subr.mxu0 %v48
  %196 = vmatpush1.msra.mxu0 %v47
  %197 = vmatprep.subr.mxu0 %v44
  %198 = vmatpush1.msra.mxu0 %v43
  %199 = vmatprep.subr.mxu0 %v40
  %200 = vmatpush1.msra.mxu0 %v39
  %201 = vmatprep.subr.mxu0 0.0
  %202 = vmatpush2.msra.mxu0 0.0
  %203 = vmatprep.subr.mxu0 0.0
  %204 = vmatpush2.msra.mxu0 0.0
  %205 = vmatprep.subr.mxu0 0.0
  %206 = vmatpush2.msra.mxu0 0.0
  %207 = vmatprep.subr.mxu0 0.0
  %208 = vmatpush2.msra.mxu0 0.0
  %209 = vmatprep.subr.mxu0 0.0
  %210 = vmatpush2.msra.mxu0 0.0
  %211 = vmatprep.subr.mxu0 0.0
  %212 = vmatpush2.msra.mxu0 0.0
  %213 = vmatprep.subr.mxu0 0.0
  %214 = vmatpush2.msra.mxu0 0.0
  %215 = vmatprep.subr.mxu0 0.0
  %216 = vmatpush2.msra.mxu0 0.0
  %217 = vmatprep.subr.mxu0 0.0
  %218 = vmatpush2.msra.mxu0 0.0
  %219 = vmatprep.subr.mxu0 0.0
  %220 = vmatpush2.msra.mxu0 0.0
  %221 = vmatprep.subr.mxu0 0.0
  %222 = vmatpush2.msra.mxu0 0.0
  %223 = vmatprep.subr.mxu0 0.0
  %224 = vmatpush2.msra.mxu0 0.0
  %225 = vmatprep.subr.mxu0 0.0
  %226 = vmatpush2.msra.mxu0 0.0
  %227 = vmatprep.subr.mxu0 0.0
  %228 = vmatpush2.msra.mxu0 0.0
  %229 = vmatprep.subr.mxu0 0.0
  %230 = vmatpush2.msra.mxu0 0.0
  %231 = vmatprep.subr.mxu0 0.0
  %232 = vmatpush2.msra.mxu0 0.0
  %233 = vmatprep.mubr.f32.mxu0 0.0
  %234 = vmatmul.mubr.f32.gmra.mxu0 %v87
  %v235 = vpop.f32.mrf.mxu0
  %v236 = vadd.f32 %v78, %v235
  %v237 = vpop.f32.mrf.mxu0
  %v238 = vadd.f32 %v78, %v237
  %239 = vmatprep.mubr.f32.mxu0 0.0
  %240 = vmatmul.mubr.f32.gmra.mxu0 %v90
  %v241 = vpop.f32.mrf.mxu0
  %v242 = vadd.f32 %v83, %v241
  %v243 = vpop.f32.mrf.mxu0
  %v244 = vadd.f32 %v83, %v243
  %245 = vdwg.mxu0
  %v246 = vmul.f32 %v159, %v159
  %v247 = vmul.f32 %v161, %v161
  %v248 = vmul.f32 %v236, %v236
  %v249 = vmul.f32 %v238, %v238
  %v250 = vmul.f32 %v165, %v165
  %v251 = vmul.f32 %v167, %v167
  %v252 = vmul.f32 %v242, %v242
  %v253 = vmul.f32 %v244, %v244
  %v254 = vadd.f32 %v246, %v250
  %v255 = vadd.f32 %v247, %v251
  %v256 = vadd.f32 %v248, %v252
  %v257 = vadd.f32 %v249, %v253
  %v258 = vrsqrt.pop %v254
  %v259 = vmul.f32 %v254, %v258
  %vm260 = vcmp.eq.f32.partialorder %v254, inf
  %v261 = vsel %vm260, %v254, %v259
  %vm262 = vcmp.eq.f32.partialorder %v254, 0.0
  %v263 = vand.u32 %v254, 2147483648
  %v264 = vsel %vm262, %v263, %v261
  %v265 = vrsqrt.pop %v255
  %v266 = vmul.f32 %v255, %v265
  %vm267 = vcmp.eq.f32.partialorder %v255, inf
  %v268 = vsel %vm267, %v255, %v266
  %vm269 = vcmp.eq.f32.partialorder %v255, 0.0
  %v270 = vand.u32 %v255, 2147483648
  %v271 = vsel %vm269, %v270, %v268
  %v272 = vrsqrt.pop %v256
  %v273 = vmul.f32 %v256, %v272
  %vm274 = vcmp.eq.f32.partialorder %v256, inf
  %v275 = vsel %vm274, %v256, %v273
  %vm276 = vcmp.eq.f32.partialorder %v256, 0.0
  %v277 = vand.u32 %v256, 2147483648
  %v278 = vsel %vm276, %v277, %v275
  %v279 = vrsqrt.pop %v257
  %v280 = vmul.f32 %v257, %v279
  %vm281 = vcmp.eq.f32.partialorder %v257, inf
  %v282 = vsel %vm281, %v257, %v280
  %vm283 = vcmp.eq.f32.partialorder %v257, 0.0
  %v284 = vand.u32 %v257, 2147483648
  %v285 = vsel %vm283, %v284, %v282
  %v286 = vld [vmem:[%s7] sm:$0xff]
  %v287 = vld [vmem:[%s7 + $0x8] sm:$0xff]
  %v288 = vld [vmem:[%s7 + $0x10] sm:$0xff]
  %v289 = vld [vmem:[%s7 + $0x18] sm:$0xff]
  %v290 = vld [vmem:[%s7 + $0x20] sm:$0xff]
  %v291 = vld [vmem:[%s7 + $0x28] sm:$0xff]
  %v292 = vld [vmem:[%s7 + $0x30] sm:$0xff]
  %v293 = vld [vmem:[%s7 + $0x38] sm:$0xff]
  %v294 = vld [vmem:[%s7 + $0x40] sm:$0xff]
  %v295 = vld [vmem:[%s7 + $0x48] sm:$0xff]
  %v296 = vld [vmem:[%s7 + $0x50] sm:$0xff]
  %v297 = vld [vmem:[%s7 + $0x58] sm:$0xff]
  %v298 = vld [vmem:[%s7 + $0x60] sm:$0xff]
  %v299 = vld [vmem:[%s7 + $0x68] sm:$0xff]
  %v300 = vld [vmem:[%s7 + $0x70] sm:$0xff]
  %v301 = vld [vmem:[%s7 + $0x78] sm:$0xff]
  %v302 = vld [vmem:[%s7 + $0x80] sm:$0xff]
  %v303 = vld [vmem:[%s7 + $0x88] sm:$0xff]
  %v304 = vld [vmem:[%s7 + $0x90] sm:$0xff]
  %v305 = vld [vmem:[%s7 + $0x98] sm:$0xff]
  %v306 = vld [vmem:[%s7 + $0xa0] sm:$0xff]
  %v307 = vld [vmem:[%s7 + $0xa8] sm:$0xff]
  %v308 = vld [vmem:[%s7 + $0xb0] sm:$0xff]
  %v309 = vld [vmem:[%s7 + $0xb8] sm:$0xff]
  %v310 = vld [vmem:[%s7 + $0xc0] sm:$0xff]
  %v311 = vld [vmem:[%s7 + $0xc8] sm:$0xff]
  %v312 = vld [vmem:[%s7 + $0xd0] sm:$0xff]
  %v313 = vld [vmem:[%s7 + $0xd8] sm:$0xff]
  %v314 = vld [vmem:[%s7 + $0xe0] sm:$0xff]
  %v315 = vld [vmem:[%s7 + $0xe8] sm:$0xff]
  %v316 = vld [vmem:[%s7 + $0xf0] sm:$0xff]
  %v317 = vld [vmem:[%s7 + $0xf8] sm:$0xff]
  %v318 = vld [vmem:[%s7 + $0x100] sm:$0xff]
  %v319 = vld [vmem:[%s7 + $0x108] sm:$0xff]
  %v320 = vld [vmem:[%s7 + $0x110] sm:$0xff]
  %v321 = vld [vmem:[%s7 + $0x118] sm:$0xff]
  %v322 = vld [vmem:[%s7 + $0x120] sm:$0xff]
  %v323 = vld [vmem:[%s7 + $0x128] sm:$0xff]
  %v324 = vld [vmem:[%s7 + $0x130] sm:$0xff]
  %v325 = vld [vmem:[%s7 + $0x138] sm:$0xff]
  %v326 = vld [vmem:[%s7 + $0x140] sm:$0xff]
  %v327 = vld [vmem:[%s7 + $0x148] sm:$0xff]
  %v328 = vld [vmem:[%s7 + $0x150] sm:$0xff]
  %v329 = vld [vmem:[%s7 + $0x158] sm:$0xff]
  %v330 = vld [vmem:[%s7 + $0x160] sm:$0xff]
  %v331 = vld [vmem:[%s7 + $0x168] sm:$0xff]
  %v332 = vld [vmem:[%s7 + $0x170] sm:$0xff]
  %v333 = vld [vmem:[%s7 + $0x178] sm:$0xff]
  %v334 = vld [vmem:[%s7 + $0x180] sm:$0xff]
  %v335 = vld [vmem:[%s7 + $0x188] sm:$0xff]
  %v336 = vld [vmem:[%s7 + $0x190] sm:$0xff]
  %v337 = vld [vmem:[%s7 + $0x198] sm:$0xff]
  %v338 = vld [vmem:[%s7 + $0x1a0] sm:$0xff]
  %v339 = vld [vmem:[%s7 + $0x1a8] sm:$0xff]
  %v340 = vld [vmem:[%s7 + $0x1b0] sm:$0xff]
  %v341 = vld [vmem:[%s7 + $0x1b8] sm:$0xff]
  %v342 = vld [vmem:[%s7 + $0x1c0] sm:$0xff]
  %v343 = vld [vmem:[%s7 + $0x1c8] sm:$0xff]
  %v344 = vld [vmem:[%s7 + $0x1d0] sm:$0xff]
  %v345 = vld [vmem:[%s7 + $0x1d8] sm:$0xff]
  %v346 = vld [vmem:[%s7 + $0x1e0] sm:$0xff]
  %v347 = vld [vmem:[%s7 + $0x1e8] sm:$0xff]
  %v348 = vld [vmem:[%s7 + $0x1f0] sm:$0xff]
  %v349 = vld [vmem:[%s7 + $0x1f8] sm:$0xff]
  %350 = vmatprep.subr.mxu0 0.0
  %351 = vmatpush1.msra.mxu0 %v301
  %352 = vmatprep.subr.mxu0 0.0
  %353 = vmatpush1.msra.mxu0 %v300
  %354 = vmatprep.subr.mxu0 0.0
  %355 = vmatpush1.msra.mxu0 %v299
  %356 = vmatprep.subr.mxu0 0.0
  %357 = vmatpush1.msra.mxu0 %v298
  %358 = vmatprep.subr.mxu0 0.0
  %359 = vmatpush1.msra.mxu0 %v297
  %360 = vmatprep.subr.mxu0 0.0
  %361 = vmatpush1.msra.mxu0 %v296
  %362 = vmatprep.subr.mxu0 0.0
  %363 = vmatpush1.msra.mxu0 %v295
  %364 = vmatprep.subr.mxu0 0.0
  %365 = vmatpush1.msra.mxu0 %v294
  %366 = vmatprep.subr.mxu0 0.0
  %367 = vmatpush1.msra.mxu0 %v293
  %368 = vmatprep.subr.mxu0 0.0
  %369 = vmatpush1.msra.mxu0 %v292
  %370 = vmatprep.subr.mxu0 0.0
  %371 = vmatpush1.msra.mxu0 %v291
  %372 = vmatprep.subr.mxu0 0.0
  %373 = vmatpush1.msra.mxu0 %v290
  %374 = vmatprep.subr.mxu0 0.0
  %375 = vmatpush1.msra.mxu0 %v289
  %376 = vmatprep.subr.mxu0 0.0
  %377 = vmatpush1.msra.mxu0 %v288
  %378 = vmatprep.subr.mxu0 0.0
  %379 = vmatpush1.msra.mxu0 %v287
  %380 = vmatprep.subr.mxu0 0.0
  %381 = vmatpush1.msra.mxu0 %v286
  %382 = vmatprep.subr.mxu0 0.0
  %383 = vmatpush2.msra.mxu0 %v317
  %384 = vmatprep.subr.mxu0 0.0
  %385 = vmatpush2.msra.mxu0 %v316
  %386 = vmatprep.subr.mxu0 0.0
  %387 = vmatpush2.msra.mxu0 %v315
  %388 = vmatprep.subr.mxu0 0.0
  %389 = vmatpush2.msra.mxu0 %v314
  %390 = vmatprep.subr.mxu0 0.0
  %391 = vmatpush2.msra.mxu0 %v313
  %392 = vmatprep.subr.mxu0 0.0
  %393 = vmatpush2.msra.mxu0 %v312
  %394 = vmatprep.subr.mxu0 0.0
  %395 = vmatpush2.msra.mxu0 %v311
  %396 = vmatprep.subr.mxu0 0.0
  %397 = vmatpush2.msra.mxu0 %v310
  %398 = vmatprep.subr.mxu0 0.0
  %399 = vmatpush2.msra.mxu0 %v309
  %400 = vmatprep.subr.mxu0 0.0
  %401 = vmatpush2.msra.mxu0 %v308
  %402 = vmatprep.subr.mxu0 0.0
  %403 = vmatpush2.msra.mxu0 %v307
  %404 = vmatprep.subr.mxu0 0.0
  %405 = vmatpush2.msra.mxu0 %v306
  %406 = vmatprep.subr.mxu0 0.0
  %407 = vmatpush2.msra.mxu0 %v305
  %408 = vmatprep.subr.mxu0 0.0
  %409 = vmatpush2.msra.mxu0 %v304
  %410 = vmatprep.subr.mxu0 0.0
  %411 = vmatpush2.msra.mxu0 %v303
  %412 = vmatprep.subr.mxu0 0.0
  %413 = vmatpush2.msra.mxu0 %v302
  %414 = vmatprep.mubr.f32.mxu0 %v271
  %415 = vmatmul.mubr.f32.gmra.mxu0 %v264
  %v416 = vpop.f32.mrf.mxu0
  %v417 = vadd.f32 0.0, %v416
  %v418 = vpop.f32.mrf.mxu0
  %419 = vdwg.mxu0
  %420 = vmatprep.subr.mxu0 0.0
  %421 = vmatpush1.msra.mxu0 %v333
  %422 = vmatprep.subr.mxu0 0.0
  %423 = vmatpush1.msra.mxu0 %v332
  %424 = vmatprep.subr.mxu0 0.0
  %425 = vmatpush1.msra.mxu0 %v331
  %426 = vmatprep.subr.mxu0 0.0
  %427 = vmatpush1.msra.mxu0 %v330
  %428 = vmatprep.subr.mxu0 0.0
  %429 = vmatpush1.msra.mxu0 %v329
  %430 = vmatprep.subr.mxu0 0.0
  %431 = vmatpush1.msra.mxu0 %v328
  %432 = vmatprep.subr.mxu0 0.0
  %433 = vmatpush1.msra.mxu0 %v327
  %434 = vmatprep.subr.mxu0 0.0
  %435 = vmatpush1.msra.mxu0 %v326
  %436 = vmatprep.subr.mxu0 0.0
  %437 = vmatpush1.msra.mxu0 %v325
  %438 = vmatprep.subr.mxu0 0.0
  %439 = vmatpush1.msra.mxu0 %v324
  %440 = vmatprep.subr.mxu0 0.0
  %441 = vmatpush1.msra.mxu0 %v323
  %442 = vmatprep.subr.mxu0 0.0
  %443 = vmatpush1.msra.mxu0 %v322
  %444 = vmatprep.subr.mxu0 0.0
  %445 = vmatpush1.msra.mxu0 %v321
  %446 = vmatprep.subr.mxu0 0.0
  %447 = vmatpush1.msra.mxu0 %v320
  %448 = vmatprep.subr.mxu0 0.0
  %449 = vmatpush1.msra.mxu0 %v319
  %450 = vmatprep.subr.mxu0 0.0
  %451 = vmatpush1.msra.mxu0 %v318
  %452 = vmatprep.subr.mxu0 0.0
  %453 = vmatpush2.msra.mxu0 %v349
  %454 = vmatprep.subr.mxu0 0.0
  %455 = vmatpush2.msra.mxu0 %v348
  %456 = vmatprep.subr.mxu0 0.0
  %457 = vmatpush2.msra.mxu0 %v347
  %458 = vmatprep.subr.mxu0 0.0
  %459 = vmatpush2.msra.mxu0 %v346
  %460 = vmatprep.subr.mxu0 0.0
  %461 = vmatpush2.msra.mxu0 %v345
  %462 = vmatprep.subr.mxu0 0.0
  %463 = vmatpush2.msra.mxu0 %v344
  %464 = vmatprep.subr.mxu0 0.0
  %465 = vmatpush2.msra.mxu0 %v343
  %466 = vmatprep.subr.mxu0 0.0
  %467 = vmatpush2.msra.mxu0 %v342
  %468 = vmatprep.subr.mxu0 0.0
  %469 = vmatpush2.msra.mxu0 %v341
  %470 = vmatprep.subr.mxu0 0.0
  %471 = vmatpush2.msra.mxu0 %v340
  %472 = vmatprep.subr.mxu0 0.0
  %473 = vmatpush2.msra.mxu0 %v339
  %474 = vmatprep.subr.mxu0 0.0
  %475 = vmatpush2.msra.mxu0 %v338
  %476 = vmatprep.subr.mxu0 0.0
  %477 = vmatpush2.msra.mxu0 %v337
  %478 = vmatprep.subr.mxu0 0.0
  %479 = vmatpush2.msra.mxu0 %v336
  %480 = vmatprep.subr.mxu0 0.0
  %481 = vmatpush2.msra.mxu0 %v335
  %482 = vmatprep.subr.mxu0 0.0
  %483 = vmatpush2.msra.mxu0 %v334
  %484 = vmatprep.mubr.f32.mxu0 %v285
  %485 = vmatmul.mubr.f32.gmra.mxu0 %v278
  %v486 = vpop.f32.mrf.mxu0
  %v487 = vadd.f32 %v417, %v486
  %v488 = vpop.f32.mrf.mxu0
  %489 = vdwg.mxu0
  %v490 = vmul.f32 %v487, 0.00390625
  %v491 = vld [vmem:[%s3] sm:$0xff]
  %v492 = vld [vmem:[%s4] sm:$0xff]
  %494 = vset.pattern.permute.xlu0 0
  %495 = vperm.xlu0 %494, %v492
  %v496 = vpop.permute.xlu0 %495
  %vm498 = vcmask 64512
  %v500 = vsel %vm498, %v491, 0
  %502 = vmatprep.subr.mxu0 0.0
  %503 = vmatpush1.msra.mxu0 0.0
  %504 = vmatprep.subr.mxu0 0.0
  %505 = vmatpush1.msra.mxu0 0.0
  %506 = vmatprep.subr.mxu0 0.0
  %507 = vmatpush1.msra.mxu0 0.0
  %508 = vmatprep.subr.mxu0 0.0
  %509 = vmatpush1.msra.mxu0 0.0
  %510 = vmatprep.subr.mxu0 0.0
  %511 = vmatpush1.msra.mxu0 0.0
  %512 = vmatprep.subr.mxu0 0.0
  %513 = vmatpush1.msra.mxu0 0.0
  %514 = vmatprep.subr.mxu0 0.0
  %515 = vmatpush1.msra.mxu0 0.0
  %516 = vmatprep.subr.mxu0 0.0
  %517 = vmatpush1.msra.mxu0 0.0
  %518 = vmatprep.subr.mxu0 0.0
  %519 = vmatpush1.msra.mxu0 0.0
  %520 = vmatprep.subr.mxu0 0.0
  %521 = vmatpush1.msra.mxu0 0.0
  %522 = vmatprep.subr.mxu0 0.0
  %523 = vmatpush1.msra.mxu0 0.0
  %524 = vmatprep.subr.mxu0 0.0
  %525 = vmatpush1.msra.mxu0 0.0
  %526 = vmatprep.subr.mxu0 0.0
  %527 = vmatpush1.msra.mxu0 0.0
  %528 = vmatprep.subr.mxu0 0.0
  %529 = vmatpush1.msra.mxu0 0.0
  %530 = vmatprep.subr.mxu0 0.0
  %531 = vmatpush1.msra.mxu0 0.0
  %532 = vmatprep.subr.mxu0 0.0
  %533 = vmatpush1.msra.mxu0 %v490
  %534 = vmatprep.subr.mxu0 0.0
  %535 = vmatpush2.msra.mxu0 0.0
  %536 = vmatprep.subr.mxu0 0.0
  %537 = vmatpush2.msra.mxu0 0.0
  %538 = vmatprep.subr.mxu0 0.0
  %539 = vmatpush2.msra.mxu0 0.0
  %540 = vmatprep.subr.mxu0 0.0
  %541 = vmatpush2.msra.mxu0 0.0
  %542 = vmatprep.subr.mxu0 0.0
  %543 = vmatpush2.msra.mxu0 0.0
  %544 = vmatprep.subr.mxu0 0.0
  %545 = vmatpush2.msra.mxu0 0.0
  %546 = vmatprep.subr.mxu0 0.0
  %547 = vmatpush2.msra.mxu0 0.0
  %548 = vmatprep.subr.mxu0 0.0
  %549 = vmatpush2.msra.mxu0 0.0
  %550 = vmatprep.subr.mxu0 0.0
  %551 = vmatpush2.msra.mxu0 0.0
  %552 = vmatprep.subr.mxu0 0.0
  %553 = vmatpush2.msra.mxu0 0.0
  %554 = vmatprep.subr.mxu0 0.0
  %555 = vmatpush2.msra.mxu0 0.0
  %556 = vmatprep.subr.mxu0 0.0
  %557 = vmatpush2.msra.mxu0 0.0
  %558 = vmatprep.subr.mxu0 0.0
  %559 = vmatpush2.msra.mxu0 0.0
  %560 = vmatprep.subr.mxu0 0.0
  %561 = vmatpush2.msra.mxu0 0.0
  %562 = vmatprep.subr.mxu0 0.0
  %563 = vmatpush2.msra.mxu0 0.0
  %564 = vmatprep.subr.mxu0 0.0
  %565 = vmatpush2.msra.mxu0 0.0
  %566 = vmatprep.mubr.f32.mxu0 0.0
  %567 = vmatmul.mubr.f32.gmra.mxu0 %v500
  %v568 = vpop.f32.mrf.mxu0
  %v569 = vadd.f32 %v496, %v568
  %v570 = vpop.f32.mrf.mxu0
  %571 = vdwg.mxu0
  %v572 = vmax.f32 %v569, 0.0
  %v573 = vld [vmem:[%s5] sm:$0xff]
  %v574 = vld [vmem:[%s6] sm:$0xff]
  %576 = vset.pattern.permute.xlu0 0
  %577 = vperm.xlu0 %576, %v574
  %v578 = vpop.permute.xlu0 %577
  %v581 = vsel %vm498, %v573, 0
  %583 = vmatprep.subr.mxu0 0.0
  %584 = vmatpush1.msra.mxu0 0.0
  %585 = vmatprep.subr.mxu0 0.0
  %586 = vmatpush1.msra.mxu0 0.0
  %587 = vmatprep.subr.mxu0 0.0
  %588 = vmatpush1.msra.mxu0 0.0
  %589 = vmatprep.subr.mxu0 0.0
  %590 = vmatpush1.msra.mxu0 0.0
  %591 = vmatprep.subr.mxu0 0.0
  %592 = vmatpush1.msra.mxu0 0.0
  %593 = vmatprep.subr.mxu0 0.0
  %594 = vmatpush1.msra.mxu0 0.0
  %595 = vmatprep.subr.mxu0 0.0
  %596 = vmatpush1.msra.mxu0 0.0
  %597 = vmatprep.subr.mxu0 0.0
  %598 = vmatpush1.msra.mxu0 0.0
  %599 = vmatprep.subr.mxu0 0.0
  %600 = vmatpush1.msra.mxu0 0.0
  %601 = vmatprep.subr.mxu0 0.0
  %602 = vmatpush1.msra.mxu0 0.0
  %603 = vmatprep.subr.mxu0 0.0
  %604 = vmatpush1.msra.mxu0 0.0
  %605 = vmatprep.subr.mxu0 0.0
  %606 = vmatpush1.msra.mxu0 0.0
  %607 = vmatprep.subr.mxu0 0.0
  %608 = vmatpush1.msra.mxu0 0.0
  %609 = vmatprep.subr.mxu0 0.0
  %610 = vmatpush1.msra.mxu0 0.0
  %611 = vmatprep.subr.mxu0 0.0
  %612 = vmatpush1.msra.mxu0 0.0
  %613 = vmatprep.subr.mxu0 0.0
  %614 = vmatpush1.msra.mxu0 %v572
  %615 = vmatprep.subr.mxu0 0.0
  %616 = vmatpush2.msra.mxu0 0.0
  %617 = vmatprep.subr.mxu0 0.0
  %618 = vmatpush2.msra.mxu0 0.0
  %619 = vmatprep.subr.mxu0 0.0
  %620 = vmatpush2.msra.mxu0 0.0
  %621 = vmatprep.subr.mxu0 0.0
  %622 = vmatpush2.msra.mxu0 0.0
  %623 = vmatprep.subr.mxu0 0.0
  %624 = vmatpush2.msra.mxu0 0.0
  %625 = vmatprep.subr.mxu0 0.0
  %626 = vmatpush2.msra.mxu0 0.0
  %627 = vmatprep.subr.mxu0 0.0
  %628 = vmatpush2.msra.mxu0 0.0
  %629 = vmatprep.subr.mxu0 0.0
  %630 = vmatpush2.msra.mxu0 0.0
  %631 = vmatprep.subr.mxu0 0.0
  %632 = vmatpush2.msra.mxu0 0.0
  %633 = vmatprep.subr.mxu0 0.0
  %634 = vmatpush2.msra.mxu0 0.0
  %635 = vmatprep.subr.mxu0 0.0
  %636 = vmatpush2.msra.mxu0 0.0
  %637 = vmatprep.subr.mxu0 0.0
  %638 = vmatpush2.msra.mxu0 0.0
  %639 = vmatprep.subr.mxu0 0.0
  %640 = vmatpush2.msra.mxu0 0.0
  %641 = vmatprep.subr.mxu0 0.0
  %642 = vmatpush2.msra.mxu0 0.0
  %643 = vmatprep.subr.mxu0 0.0
  %644 = vmatpush2.msra.mxu0 0.0
  %645 = vmatprep.subr.mxu0 0.0
  %646 = vmatpush2.msra.mxu0 0.0
  %647 = vmatprep.mubr.f32.mxu0 0.0
  %648 = vmatmul.mubr.f32.gmra.mxu0 %v581
  %v649 = vpop.f32.mrf.mxu0
  %v650 = vadd.f32 %v578, %v649
  %v651 = vpop.f32.mrf.mxu0
  %652 = vdwg.mxu0
  %v653 = vsub.f32 0.0, %v650
  %v654 = vmul.f32 %v653, 1.442695
  %v655 = vpow.pop %v654
  %v656 = vadd.f32 %v655, 1.0
  %v657 = vrcp.pop %v656
  %v658 = vmul.f32 1.0, %v657
  %v659 = vld [vmem:[%s8] sm:$0xff]
  %v660 = vld [vmem:[%s8 + $0x8] sm:$0xff]
  %v661 = vld [vmem:[%s8 + $0x10] sm:$0xff]
  %v662 = vld [vmem:[%s8 + $0x18] sm:$0xff]
  %v664 = vsel %vm498, %v658, 0
  %666 = vmatprep.subr.mxu0 0.0
  %667 = vmatpush1.msra.mxu0 0.0
  %668 = vmatprep.subr.mxu0 0.0
  %669 = vmatpush1.msra.mxu0 0.0
  %670 = vmatprep.subr.mxu0 0.0
  %671 = vmatpush1.msra.mxu0 0.0
  %672 = vmatprep.subr.mxu0 0.0
  %673 = vmatpush1.msra.mxu0 0.0
  %674 = vmatprep.subr.mxu0 0.0
  %675 = vmatpush1.msra.mxu0 0.0
  %676 = vmatprep.subr.mxu0 0.0
  %677 = vmatpush1.msra.mxu0 0.0
  %678 = vmatprep.subr.mxu0 0.0
  %679 = vmatpush1.msra.mxu0 0.0
  %680 = vmatprep.subr.mxu0 0.0
  %681 = vmatpush1.msra.mxu0 0.0
  %682 = vmatprep.subr.mxu0 0.0
  %683 = vmatpush1.msra.mxu0 0.0
  %684 = vmatprep.subr.mxu0 0.0
  %685 = vmatpush1.msra.mxu0 0.0
  %686 = vmatprep.subr.mxu0 0.0
  %687 = vmatpush1.msra.mxu0 0.0
  %688 = vmatprep.subr.mxu0 0.0
  %689 = vmatpush1.msra.mxu0 0.0
  %690 = vmatprep.subr.mxu0 0.0
  %691 = vmatpush1.msra.mxu0 0.0
  %692 = vmatprep.subr.mxu0 0.0
  %693 = vmatpush1.msra.mxu0 0.0
  %694 = vmatprep.subr.mxu0 0.0
  %695 = vmatpush1.msra.mxu0 0.0
  %696 = vmatprep.subr.mxu0 %v660
  %697 = vmatpush1.msra.mxu0 %v659
  %698 = vmatprep.subr.mxu0 0.0
  %699 = vmatpush2.msra.mxu0 0.0
  %700 = vmatprep.subr.mxu0 0.0
  %701 = vmatpush2.msra.mxu0 0.0
  %702 = vmatprep.subr.mxu0 0.0
  %703 = vmatpush2.msra.mxu0 0.0
  %704 = vmatprep.subr.mxu0 0.0
  %705 = vmatpush2.msra.mxu0 0.0
  %706 = vmatprep.subr.mxu0 0.0
  %707 = vmatpush2.msra.mxu0 0.0
  %708 = vmatprep.subr.mxu0 0.0
  %709 = vmatpush2.msra.mxu0 0.0
  %710 = vmatprep.subr.mxu0 0.0
  %711 = vmatpush2.msra.mxu0 0.0
  %712 = vmatprep.subr.mxu0 0.0
  %713 = vmatpush2.msra.mxu0 0.0
  %714 = vmatprep.subr.mxu0 0.0
  %715 = vmatpush2.msra.mxu0 0.0
  %716 = vmatprep.subr.mxu0 0.0
  %717 = vmatpush2.msra.mxu0 0.0
  %718 = vmatprep.subr.mxu0 0.0
  %719 = vmatpush2.msra.mxu0 0.0
  %720 = vmatprep.subr.mxu0 0.0
  %721 = vmatpush2.msra.mxu0 0.0
  %722 = vmatprep.subr.mxu0 0.0
  %723 = vmatpush2.msra.mxu0 0.0
  %724 = vmatprep.subr.mxu0 0.0
  %725 = vmatpush2.msra.mxu0 0.0
  %726 = vmatprep.subr.mxu0 0.0
  %727 = vmatpush2.msra.mxu0 0.0
  %728 = vmatprep.subr.mxu0 0.0
  %729 = vmatpush2.msra.mxu0 0.0
  %730 = vmatprep.mubr.f32.mxu0 0.0
  %731 = vmatmul.mubr.f32.gmra.mxu0 %v664
  %v732 = vpop.f32.mrf.mxu0
  %v733 = vadd.f32 0.0, %v732
  %v734 = vpop.f32.mrf.mxu0
  %v735 = vadd.f32 0.0, %v734
  %736 = vdwg.mxu0
  %737 = vmatprep.subr.mxu0 0.0
  %738 = vmatpush1.msra.mxu0 0.0
  %739 = vmatprep.subr.mxu0 0.0
  %740 = vmatpush1.msra.mxu0 0.0
  %741 = vmatprep.subr.mxu0 0.0
  %742 = vmatpush1.msra.mxu0 0.0
  %743 = vmatprep.subr.mxu0 0.0
  %744 = vmatpush1.msra.mxu0 0.0
  %745 = vmatprep.subr.mxu0 0.0
  %746 = vmatpush1.msra.mxu0 0.0
  %747 = vmatprep.subr.mxu0 0.0
  %748 = vmatpush1.msra.mxu0 0.0
  %749 = vmatprep.subr.mxu0 0.0
  %750 = vmatpush1.msra.mxu0 0.0
  %751 = vmatprep.subr.mxu0 0.0
  %752 = vmatpush1.msra.mxu0 0.0
  %753 = vmatprep.subr.mxu0 0.0
  %754 = vmatpush1.msra.mxu0 0.0
  %755 = vmatprep.subr.mxu0 0.0
  %756 = vmatpush1.msra.mxu0 0.0
  %757 = vmatprep.subr.mxu0 0.0
  %758 = vmatpush1.msra.mxu0 0.0
  %759 = vmatprep.subr.mxu0 0.0
  %760 = vmatpush1.msra.mxu0 0.0
  %761 = vmatprep.subr.mxu0 0.0
  %762 = vmatpush1.msra.mxu0 0.0
  %763 = vmatprep.subr.mxu0 0.0
  %764 = vmatpush1.msra.mxu0 0.0
  %765 = vmatprep.subr.mxu0 0.0
  %766 = vmatpush1.msra.mxu0 0.0
  %767 = vmatprep.subr.mxu0 %v662
  %768 = vmatpush1.msra.mxu0 %v661
  %769 = vmatprep.subr.mxu0 0.0
  %770 = vmatpush2.msra.mxu0 0.0
  %771 = vmatprep.subr.mxu0 0.0
  %772 = vmatpush2.msra.mxu0 0.0
  %773 = vmatprep.subr.mxu0 0.0
  %774 = vmatpush2.msra.mxu0 0.0
  %775 = vmatprep.subr.mxu0 0.0
  %776 = vmatpush2.msra.mxu0 0.0
  %777 = vmatprep.subr.mxu0 0.0
  %778 = vmatpush2.msra.mxu0 0.0
  %779 = vmatprep.subr.mxu0 0.0
  %780 = vmatpush2.msra.mxu0 0.0
  %781 = vmatprep.subr.mxu0 0.0
  %782 = vmatpush2.msra.mxu0 0.0
  %783 = vmatprep.subr.mxu0 0.0
  %784 = vmatpush2.msra.mxu0 0.0
  %785 = vmatprep.subr.mxu0 0.0
  %786 = vmatpush2.msra.mxu0 0.0
  %787 = vmatprep.subr.mxu0 0.0
  %788 = vmatpush2.msra.mxu0 0.0
  %789 = vmatprep.subr.mxu0 0.0
  %790 = vmatpush2.msra.mxu0 0.0
  %791 = vmatprep.subr.mxu0 0.0
  %792 = vmatpush2.msra.mxu0 0.0
  %793 = vmatprep.subr.mxu0 0.0
  %794 = vmatpush2.msra.mxu0 0.0
  %795 = vmatprep.subr.mxu0 0.0
  %796 = vmatpush2.msra.mxu0 0.0
  %797 = vmatprep.subr.mxu0 0.0
  %798 = vmatpush2.msra.mxu0 0.0
  %799 = vmatprep.subr.mxu0 0.0
  %800 = vmatpush2.msra.mxu0 0.0
  %801 = vmatprep.mubr.f32.mxu0 0.0
  %802 = vmatmul.mubr.f32.gmra.mxu0 %v664
  %v803 = vpop.f32.mrf.mxu0
  %v804 = vadd.f32 0.0, %v803
  %v805 = vpop.f32.mrf.mxu0
  %v806 = vadd.f32 0.0, %v805
  %807 = vdwg.mxu0
  %v808 = vld [vmem:[%s9] sm:$0xff]
  %v809 = vld [vmem:[%s9 + $0x8] sm:$0xff]
  %v810 = vld [vmem:[%s9 + $0x10] sm:$0xff]
  %v811 = vld [vmem:[%s9 + $0x18] sm:$0xff]
  %v812 = vld [vmem:[%s9 + $0x20] sm:$0xff]
  %v813 = vld [vmem:[%s9 + $0x28] sm:$0xff]
  %v814 = vld [vmem:[%s9 + $0x30] sm:$0xff]
  %v815 = vld [vmem:[%s9 + $0x38] sm:$0xff]
  %v816 = vmul.f32 %v159, %v733
  %v817 = vmul.f32 %v161, %v735
  %v818 = vmul.f32 %v236, %v804
  %v819 = vmul.f32 %v238, %v806
  %v820 = vmul.f32 %v165, %v733
  %v821 = vmul.f32 %v167, %v735
  %v822 = vmul.f32 %v242, %v804
  %v823 = vmul.f32 %v244, %v806
  %v824 = vadd.f32 %v808, %v816
  %v825 = vadd.f32 %v809, %v817
  %v826 = vadd.f32 %v810, %v818
  %v827 = vadd.f32 %v811, %v819
  %v828 = vadd.f32 %v812, %v820
  %v829 = vadd.f32 %v813, %v821
  %v830 = vadd.f32 %v814, %v822
  %v831 = vadd.f32 %v815, %v823
  %832 = vst [vmem:[%s10] sm:$0xff] %v824
  %833 = vst [vmem:[%s10 + $0x8] sm:$0xff] %v825
  %834 = vst [vmem:[%s10 + $0x10] sm:$0xff] %v826
  %835 = vst [vmem:[%s10 + $0x18] sm:$0xff] %v827
  %836 = vst [vmem:[%s10 + $0x20] sm:$0xff] %v828
  %837 = vst [vmem:[%s10 + $0x28] sm:$0xff] %v829
  %838 = vst [vmem:[%s10 + $0x30] sm:$0xff] %v830
  %839 = vst [vmem:[%s10 + $0x38] sm:$0xff] %v831
  // Predicated region
  $region42: #{rcab_forward.3} parent=0 // pred_check
    _
  $region43: #{rcab_forward.3} parent=0 // pred_check_branch
    %841 = sbr.rel (0) target = $region45
  $region44: #{rcab_forward.3} parent=0 // pred_region
    _
  $region45: #{rcab_forward.3} parent=0 // pred_fallthru
    _
  // Predicated region
  $region46: #{rcab_forward.3} parent=0 // pred_check
    _
  $region47: #{rcab_forward.3} parent=0 // pred_check_branch
    %843 = sbr.rel (0) target = $region49
  $region48: #{rcab_forward.3} parent=0 // pred_region
    _
  $region49: #{rcab_forward.3} parent=0 // pred_fallthru
    _

</llo_original>
